<compile_context>
chip_gen: v5e
topology: v5e:2x2
jax: 0.10.0
libtpu: 0.0.40
codegen_flags: <defaults>
</compile_context>

<pallas_src>
import functools

import jax
import jax.numpy as jnp
from jax.experimental import pallas as pl
from jax.experimental.pallas import tpu as pltpu

LN_EPS = 1e-5  # nn.LayerNorm default eps
_HIGHEST = jax.lax.Precision.HIGHEST


def _channel_add(ctx, w1, b1, gamma, beta, w2, b2):
    """context (Nb, C) f32 -> channel_add term (Nb, C) f32, lane-major layout."""
    t = jax.lax.dot_general(
        ctx, w1, (((1,), (1,)), ((), ())),
        preferred_element_type=jnp.float32, precision=_HIGHEST) + b1        # (Nb, P)
    mu = jnp.mean(t, axis=-1, keepdims=True)
    var = jnp.mean((t - mu) ** 2, axis=-1, keepdims=True)  # biased, as nn.LayerNorm
    tn = (t - mu) * jax.lax.rsqrt(var + LN_EPS)
    tn = tn * gamma + beta
    tn = jnp.maximum(tn, 0.0)
    add = jax.lax.dot_general(
        tn, w2, (((1,), (1,)), ((), ())),
        preferred_element_type=jnp.float32, precision=_HIGHEST) + b2        # (Nb, C)
    return add


# --------------------------- fused single-pass path ---------------------------

def _gcam_fused_kernel(x_ref, wm_ref, bm_ref, w1_ref, b1_ref, g_ref, be_ref,
                       w2_ref, b2_ref, o_ref):
    x = x_ref[...]                                        # (Nb, C, HW) storage dtype
    nb, c, _ = x.shape

    # conv_mask logits: batched 1x1 conv C->1 on the MXU, f32 accumulation.
    wm_row = wm_ref[...].astype(x.dtype)                  # (1, C), tiny downcast
    wm_b = jnp.broadcast_to(wm_row[None], (nb, 1, c))
    logits = jnp.einsum('noc,nch->noh', wm_b, x,
                        preferred_element_type=jnp.float32) + bm_ref[0]     # (Nb,1,HW)

    # softmax over HW, kept unnormalized (normalize the tiny context instead).
    m = jnp.max(logits, axis=-1, keepdims=True)
    e = jnp.exp(logits - m)                               # (Nb,1,HW) f32
    s = jnp.sum(e, axis=-1, keepdims=True)                # (Nb,1,1)

    ctx = jnp.einsum('noh,nch->noc', e.astype(x.dtype), x,
                     preferred_element_type=jnp.float32)  # (Nb,1,C)
    ctx2 = ctx[:, 0, :] * pl.reciprocal(s[:, 0, :], approx=True)            # (Nb, C)

    add = _channel_add(ctx2, w1_ref[...], b1_ref[...], g_ref[...], be_ref[...],
                       w2_ref[...], b2_ref[...])          # (Nb, C) f32
    add_col = add[:, :, None].astype(o_ref.dtype)         # (Nb, C, 1)
    o_ref[...] = x + add_col                              # residual in storage dtype


# ----------------------- large-HW two-pass split path -------------------------

def _gcam_pool_kernel(hw, thw, x_ref, wm_ref, bm_ref, w1_ref, b1_ref, g_ref,
                      be_ref, w2_ref, b2_ref, add_ref, m_sc, s_sc, ctx_sc):
    h = pl.program_id(1)

    @pl.when(h == 0)
    def _():
        m_sc[...] = jnp.full(m_sc.shape, -jnp.inf, m_sc.dtype)
        s_sc[...] = jnp.zeros(s_sc.shape, s_sc.dtype)
        ctx_sc[...] = jnp.zeros(ctx_sc.shape, ctx_sc.dtype)

    x = x_ref[0]                                          # (C, THW) storage dtype
    wm_row = wm_ref[...].astype(x.dtype)                  # (1, C)
    logits = jax.lax.dot_general(
        wm_row, x, (((1,), (0,)), ((), ())),
        preferred_element_type=jnp.float32) + bm_ref[0]   # (1, THW)

    if hw % thw != 0:  # static: last HW block is partial -> mask the padding
        valid = hw - h * thw
        keep = jax.lax.broadcasted_iota(jnp.int32, logits.shape, 1) < valid
        logits = jnp.where(keep, logits, -jnp.inf)
        xm = jnp.where(jax.lax.broadcasted_iota(jnp.int32, x.shape, 1) < valid,
                       x, jnp.zeros_like(x))
    else:
        xm = x

    # online-softmax combine across HW blocks
    m_prev = m_sc[...]
    m_new = jnp.maximum(m_prev, jnp.max(logits, axis=-1, keepdims=True))
    alpha = jnp.exp(m_prev - m_new)
    e = jnp.exp(logits - m_new)                           # (1, THW) f32
    s_sc[...] = alpha * s_sc[...] + jnp.sum(e, axis=-1, keepdims=True)
    ctx_sc[...] = alpha * ctx_sc[...] + jax.lax.dot_general(
        e.astype(x.dtype), xm, (((1,), (1,)), ((), ())),
        preferred_element_type=jnp.float32)               # (1, C)
    m_sc[...] = m_new

    @pl.when(h == pl.num_programs(1) - 1)
    def _():
        ctx = ctx_sc[...] * pl.reciprocal(s_sc[...], approx=True)           # (1, C)
        add = _channel_add(ctx, w1_ref[...], b1_ref[...], g_ref[...],
                           be_ref[...], w2_ref[...], b2_ref[...])           # (1, C)
        add_ref[0] = jnp.transpose(add, (1, 0)).astype(add_ref.dtype)       # (C, 1)


def _gcam_bcast_add_kernel(x_ref, add_ref, o_ref):
    o_ref[0] = x_ref[0] + add_ref[0].astype(o_ref.dtype)  # (C,THW) + (C,1)


# --------------------------------- wrapper ------------------------------------

def _vmem_cap_bytes():
    try:
        phys = int(pltpu.get_tpu_info().vmem_capacity_bytes)
    except Exception:
        phys = 64 * 2**20        # conservative fallback: v7x per-TensorCore VMEM
    return (phys * 7) // 8       # headroom for compiler-internal scratch


def gcam_forward(x_nchw, params, *, donate_x=False, force_split_hw_block=None):
    wm, bm, w1, b1, gamma, beta, w2, b2 = params
    N, C, H, W = x_nchw.shape
    HW = H * W
    P = w1.shape[0]
    x = x_nchw.reshape(N, C, HW)          # metadata-only reshape, no HBM pass
    itemsize = jnp.dtype(x_nchw.dtype).itemsize

    cap = _vmem_cap_bytes()
    params_bytes = 4 * (2 * C * P + 3 * P + 2 * C + 1)
    overhead = 2 * params_bytes + (2 << 20)       # params (double-buffered) + slack
    per_item = C * HW * itemsize                  # one (1, C, HW) slab

    def _param_specs(bcast):
        return [
            pl.BlockSpec((1, C), bcast),                          # conv_mask weight
            pl.BlockSpec(memory_space=pltpu.MemorySpace.SMEM),    # conv_mask bias
            pl.BlockSpec((P, C), bcast),                          # conv1 weight
            pl.BlockSpec((1, P), bcast),                          # conv1 bias
            pl.BlockSpec((1, P), bcast),                          # LN gamma
            pl.BlockSpec((1, P), bcast),                          # LN beta
            pl.BlockSpec((C, P), bcast),                          # conv2 weight
            pl.BlockSpec((1, C), bcast),                          # conv2 bias
        ]

    param_args = (wm, bm, w1, b1, gamma, beta, w2, b2)
    use_split = (force_split_hw_block is not None
                 or 4 * per_item + overhead > cap)

    if not use_split:
        # -------- fused single pass: one (Nb, C, HW) slab per grid step --------
        nb_max = max(1, (cap - overhead) // (4 * per_item))
        nb_goal = max(1, min(N, nb_max, -(-(1 << 20) // per_item)))
        if N > 1:
            nb_goal = max(1, min(nb_goal, N // 2))   # keep >=2 steps for megacore
        nb = max(d for d in range(1, nb_goal + 1) if N % d == 0)

        vmem_limit = int(min(cap, max(32 * 2**20, 4 * nb * per_item + overhead)))
        cost = pl.CostEstimate(
            flops=4 * N * C * (HW + P),
            transcendentals=N * HW,
            bytes_accessed=2 * N * C * HW * itemsize + params_bytes)

        out = pl.pallas_call(
            _gcam_fused_kernel,
            out_shape=jax.ShapeDtypeStruct((N, C, HW), x_nchw.dtype),
            grid_spec=pltpu.PrefetchScalarGridSpec(
                num_scalar_prefetch=0,
                grid=(N // nb,),
                in_specs=[pl.BlockSpec((nb, C, HW), lambda n: (n, 0, 0))]
                         + _param_specs(lambda n: (0, 0)),
                out_specs=pl.BlockSpec((nb, C, HW), lambda n: (n, 0, 0)),
            ),
            compiler_params=pltpu.CompilerParams(
                dimension_semantics=("parallel",),
                vmem_limit_bytes=vmem_limit),
            cost_estimate=cost,
            input_output_aliases=({0: 0} if donate_x else {}),
        )(x, *param_args)
        return out.reshape(N, C, H, W)

    # -------- split path: HW blocks (pooling pass + broadcast-add pass) --------
    thw = force_split_hw_block
    if thw is None:
        thw = ((cap - overhead) // (4 * C * itemsize)) // 128 * 128
    thw = int(max(128, min(thw, -(-HW // 128) * 128)))
    kh = -(-HW // thw)
    vmem_limit = int(min(cap, max(32 * 2**20, 4 * C * thw * itemsize + overhead)))

    # Pass 1: per-image channel_add term via online softmax over HW blocks.
    add_col32 = pl.pallas_call(
        functools.partial(_gcam_pool_kernel, HW, thw),
        out_shape=jax.ShapeDtypeStruct((N, C, 1), jnp.float32),
        grid_spec=pltpu.PrefetchScalarGridSpec(
            num_scalar_prefetch=0,
            grid=(N, kh),
            in_specs=[pl.BlockSpec((1, C, thw), lambda n, h: (n, 0, h))]
                     + _param_specs(lambda n, h: (0, 0)),
            out_specs=pl.BlockSpec((1, C, 1), lambda n, h: (n, 0, 0)),
            scratch_shapes=[pltpu.VMEM((1, 1), jnp.float32),
                            pltpu.VMEM((1, 1), jnp.float32),
                            pltpu.VMEM((1, C), jnp.float32)],
        ),
        compiler_params=pltpu.CompilerParams(
            dimension_semantics=("parallel", "arbitrary"),
            vmem_limit_bytes=vmem_limit),
        cost_estimate=pl.CostEstimate(
            flops=4 * N * C * (HW + P),
            transcendentals=N * HW,
            bytes_accessed=N * C * HW * itemsize + params_bytes),
    )(x, *param_args)

    # Pass 2: out = x + add, embarrassingly parallel over (batch, HW blocks).
    out = pl.pallas_call(
        _gcam_bcast_add_kernel,
        out_shape=jax.ShapeDtypeStruct((N, C, HW), x_nchw.dtype),
        grid_spec=pltpu.PrefetchScalarGridSpec(
            num_scalar_prefetch=0,
            grid=(N, kh),
            in_specs=[pl.BlockSpec((1, C, thw), lambda n, h: (n, 0, h)),
                      pl.BlockSpec((1, C, 1), lambda n, h: (n, 0, 0))],
            out_specs=pl.BlockSpec((1, C, thw), lambda n, h: (n, 0, h)),
        ),
        compiler_params=pltpu.CompilerParams(
            dimension_semantics=("parallel", "parallel"),
            vmem_limit_bytes=vmem_limit),
        cost_estimate=pl.CostEstimate(
            flops=N * C * HW, transcendentals=0,
            bytes_accessed=2 * N * C * HW * itemsize + N * C * 4),
        input_output_aliases=({0: 0} if donate_x else {}),
    )(x, add_col32)
    return out.reshape(N, C, H, W)


# ------------------------------ params / reference ----------------------------

def init_params(key, in_channels, out_channels):
    C, P = in_channels, out_channels   # planes = int(C * (out/C)) = out_channels
    ks = jax.random.split(key, 6)
    wm = jax.random.normal(ks[0], (1, C), jnp.float32) * 0.1     # Conv2d(C,1,1).weight
    bm = jax.random.normal(ks[1], (1,), jnp.float32) * 0.1       # Conv2d(C,1,1).bias
    w1 = jax.random.normal(ks[2], (P, C), jnp.float32) * 0.1     # Conv2d(C,P,1).weight
    b1 = jax.random.normal(ks[3], (1, P), jnp.float32) * 0.1     # Conv2d(C,P,1).bias
    gamma = jnp.ones((1, P), jnp.float32)                        # LayerNorm weight
    beta = jnp.zeros((1, P), jnp.float32)                        # LayerNorm bias
    w2 = jax.random.normal(ks[4], (C, P), jnp.float32) * 0.1     # Conv2d(P,C,1).weight
    b2 = jax.random.normal(ks[5], (1, C), jnp.float32) * 0.1     # Conv2d(P,C,1).bias
    return (wm, bm, w1, b1, gamma, beta, w2, b2)


def gcam_reference(x_nchw, params):
    """Pure-JAX reference mirroring the PyTorch ContextBlock forward."""
    wm, bm, w1, b1, gamma, beta, w2, b2 = params
    N, C, H, W = x_nchw.shape
    x = x_nchw.reshape(N, C, H * W).astype(jnp.float32)
    logits = jnp.einsum('oc,nch->noh', wm, x, precision=_HIGHEST) + bm[0]
    attn = jax.nn.softmax(logits, axis=-1)                                  # (N,1,HW)
    context = jnp.einsum('noh,nch->nc', attn, x, precision=_HIGHEST)        # (N,C)
    t = jnp.einsum('nc,pc->np', context, w1, precision=_HIGHEST) + b1       # (N,P)
    mu = jnp.mean(t, axis=-1, keepdims=True)
    var = jnp.mean((t - mu) ** 2, axis=-1, keepdims=True)
    tn = (t - mu) / jnp.sqrt(var + LN_EPS) * gamma + beta
    tn = jnp.maximum(tn, 0.0)
    add = jnp.einsum('np,cp->nc', tn, w2, precision=_HIGHEST) + b2          # (N,C)
    return (x + add[:, :, None]).reshape(N, C, H, W).astype(x_nchw.dtype)


if __name__ == "__main__":
    key = jax.random.PRNGKey(0)
    k_x, k_p, k_x2, k_x3 = jax.random.split(key, 4)

    batch, in_channels, out_channels = 2, 4, 8
    params = init_params(k_p, in_channels, out_channels)

    # Case 1: lane-aligned spatial (HW = 256), fused single-pass path.
    x = jax.random.normal(k_x, (batch, in_channels, 16, 16), jnp.float32)
    out = jax.block_until_ready(gcam_forward(x, params))
    ref = gcam_reference(x, params)
    assert out.shape == x.shape
    assert jnp.allclose(out, ref, atol=1e-2, rtol=1e-2), "mismatch (HW=256, fused)"

    # Case 2: non-multiple-of-128 spatial (HW = 49): no pad/slice, masked tail store.
    x2 = jax.random.normal(k_x2, (batch, in_channels, 7, 7), jnp.float32)
    out2 = jax.block_until_ready(gcam_forward(x2, params))
    ref2 = gcam_reference(x2, params)
    assert out2.shape == x2.shape
    assert jnp.allclose(out2, ref2, atol=1e-2, rtol=1e-2), "mismatch (HW=49, fused)"

    # Case 3: exercise the large-HW split path (online softmax over HW blocks,
    # partial tail block, then the broadcast-add pass).
    x3 = jax.random.normal(k_x3, (batch, in_channels, 18, 18), jnp.float32)
    out3 = jax.block_until_ready(gcam_forward(x3, params, force_split_hw_block=128))
    ref3 = gcam_reference(x3, params)
    assert out3.shape == x3.shape
    assert jnp.allclose(out3, ref3, atol=1e-2, rtol=1e-2), "mismatch (HW=324, split)"

    print("KERNEL_OK")
</pallas_src>

<mosaic_0001>
module attributes {stable_mosaic.version = 11 : i64} {
  func.func @_gcam_fused_kernel(%arg0: i32, %arg1: memref<1x4x256xf32, #tpu.memory_space<vmem>>, %arg2: memref<1x4xf32, #tpu.memory_space<vmem>>, %arg3: memref<1xf32, #tpu.memory_space<smem>>, %arg4: memref<8x4xf32, #tpu.memory_space<vmem>>, %arg5: memref<1x8xf32, #tpu.memory_space<vmem>>, %arg6: memref<1x8xf32, #tpu.memory_space<vmem>>, %arg7: memref<1x8xf32, #tpu.memory_space<vmem>>, %arg8: memref<4x8xf32, #tpu.memory_space<vmem>>, %arg9: memref<1x4xf32, #tpu.memory_space<vmem>>, %arg10: memref<1x4x256xf32, #tpu.memory_space<vmem>>) attributes {dimension_semantics = [#tpu.dimension_semantics<parallel>], iteration_bounds = array<i64: 2>, scalar_prefetch = 0 : i64, scratch_operands = 0 : i64, tpu.core_type = #tpu.core_type<tc>, window_params = [{transform_indices = @transform_0, window_bounds = array<i64: 1, 4, 256>}, {pipeline_mode = #tpu.pipeline_mode<synchronous>, transform_indices = @transform_1, window_bounds = array<i64: 1, 4>}, {transform_indices = @transform_2, window_bounds = array<i64: 1>}, {pipeline_mode = #tpu.pipeline_mode<synchronous>, transform_indices = @transform_3, window_bounds = array<i64: 8, 4>}, {pipeline_mode = #tpu.pipeline_mode<synchronous>, transform_indices = @transform_4, window_bounds = array<i64: 1, 8>}, {pipeline_mode = #tpu.pipeline_mode<synchronous>, transform_indices = @transform_5, window_bounds = array<i64: 1, 8>}, {pipeline_mode = #tpu.pipeline_mode<synchronous>, transform_indices = @transform_6, window_bounds = array<i64: 1, 8>}, {pipeline_mode = #tpu.pipeline_mode<synchronous>, transform_indices = @transform_7, window_bounds = array<i64: 4, 8>}, {pipeline_mode = #tpu.pipeline_mode<synchronous>, transform_indices = @transform_8, window_bounds = array<i64: 1, 4>}, {transform_indices = @transform_9, window_bounds = array<i64: 1, 4, 256>}]} {
    %c0 = arith.constant 0 : index
    %c0_0 = arith.constant 0 : index
    %c0_1 = arith.constant 0 : index
    %0 = vector.load %arg1[%c0, %c0_0, %c0_1] : memref<1x4x256xf32, #tpu.memory_space<vmem>>, vector<1x4x256xf32>
    %c0_2 = arith.constant 0 : index
    %c0_3 = arith.constant 0 : index
    %1 = vector.load %arg2[%c0_2, %c0_3] : memref<1x4xf32, #tpu.memory_space<vmem>>, vector<1x4xf32>
    %2 = vector.shape_cast %1 : vector<1x4xf32> to vector<1x1x4xf32>
    "tpu.trace_start"() <{level = 10 : i32, message = "noc,nch->noh"}> : () -> ()
    %cst = arith.constant dense<0.000000e+00> : vector<1x1x256xf32>
    %3 = tpu.matmul %2, %0, %cst {dimension_numbers = #tpu.dot_dimension_numbers<[2], [1], [1], [2], [0, 0, 0, 1, 1, 2], [0], [0]>} : vector<1x1x4xf32>, vector<1x4x256xf32>, vector<1x1x256xf32> -> vector<1x1x256xf32>
    "tpu.trace_stop"() : () -> ()
    %c0_4 = arith.constant 0 : index
    %4 = memref.load %arg3[%c0_4] : memref<1xf32, #tpu.memory_space<smem>>
    %5 = vector.broadcast %4 : f32 to vector<1x1x256xf32>
    %6 = arith.addf %3, %5 : vector<1x1x256xf32>
    %cst_5 = arith.constant dense<0xFF800000> : vector<1x1xf32>
    %7 = vector.multi_reduction <maximumf>, %6, %cst_5 [2] : vector<1x1x256xf32> to vector<1x1xf32>
    %8 = vector.shape_cast %7 : vector<1x1xf32> to vector<1x1x1xf32>
    %9 = vector.broadcast %8 : vector<1x1x1xf32> to vector<1x1x256xf32>
    %10 = arith.subf %6, %9 : vector<1x1x256xf32>
    %11 = math.exp %10 : vector<1x1x256xf32>
    %cst_6 = arith.constant dense<0.000000e+00> : vector<1x1xf32>
    %12 = vector.multi_reduction <add>, %11, %cst_6 [2] : vector<1x1x256xf32> to vector<1x1xf32>
    %13 = vector.shape_cast %12 : vector<1x1xf32> to vector<1x1x1xf32>
    "tpu.trace_start"() <{level = 10 : i32, message = "noh,nch->noc"}> : () -> ()
    %cst_7 = arith.constant dense<0.000000e+00> : vector<1x1x4xf32>
    %14 = tpu.matmul %11, %0, %cst_7 {dimension_numbers = #tpu.dot_dimension_numbers<[2], [2], [1], [1], [0, 0, 0, 1, 1, 1], [0], [0]>} : vector<1x1x256xf32>, vector<1x4x256xf32>, vector<1x1x4xf32> -> vector<1x1x4xf32>
    "tpu.trace_stop"() : () -> ()
    %15 = vector.shape_cast %14 : vector<1x1x4xf32> to vector<1x4xf32>
    %16 = vector.shape_cast %13 : vector<1x1x1xf32> to vector<1x1xf32>
    %17 = tpu.reciprocal %16 {approx = true} : vector<1x1xf32> -> vector<1x1xf32>
    %18 = vector.broadcast %17 : vector<1x1xf32> to vector<1x4xf32>
    %19 = arith.mulf %15, %18 : vector<1x4xf32>
    %c0_8 = arith.constant 0 : index
    %c0_9 = arith.constant 0 : index
    %20 = vector.load %arg4[%c0_8, %c0_9] : memref<8x4xf32, #tpu.memory_space<vmem>>, vector<8x4xf32>
    %c0_10 = arith.constant 0 : index
    %c0_11 = arith.constant 0 : index
    %21 = vector.load %arg5[%c0_10, %c0_11] : memref<1x8xf32, #tpu.memory_space<vmem>>, vector<1x8xf32>
    %c0_12 = arith.constant 0 : index
    %c0_13 = arith.constant 0 : index
    %22 = vector.load %arg6[%c0_12, %c0_13] : memref<1x8xf32, #tpu.memory_space<vmem>>, vector<1x8xf32>
    %c0_14 = arith.constant 0 : index
    %c0_15 = arith.constant 0 : index
    %23 = vector.load %arg7[%c0_14, %c0_15] : memref<1x8xf32, #tpu.memory_space<vmem>>, vector<1x8xf32>
    %c0_16 = arith.constant 0 : index
    %c0_17 = arith.constant 0 : index
    %24 = vector.load %arg8[%c0_16, %c0_17] : memref<4x8xf32, #tpu.memory_space<vmem>>, vector<4x8xf32>
    %c0_18 = arith.constant 0 : index
    %c0_19 = arith.constant 0 : index
    %25 = vector.load %arg9[%c0_18, %c0_19] : memref<1x4xf32, #tpu.memory_space<vmem>>, vector<1x4xf32>
    %cst_20 = arith.constant dense<0.000000e+00> : vector<1x8xf32>
    %26 = tpu.matmul %19, %20, %cst_20 {dimension_numbers = #tpu.dot_dimension_numbers<[1], [1], [0], [0], [0, 0, 1, 0], [], []>, precision = #tpu.contract_precision<fp32>} : vector<1x4xf32>, vector<8x4xf32>, vector<1x8xf32> -> vector<1x8xf32>
    %27 = arith.addf %26, %21 : vector<1x8xf32>
    %cst_21 = arith.constant dense<0.000000e+00> : vector<1xf32>
    %28 = vector.multi_reduction <add>, %27, %cst_21 [1] : vector<1x8xf32> to vector<1xf32>
    %29 = vector.shape_cast %28 : vector<1xf32> to vector<1x1xf32>
    %cst_22 = arith.constant 8.000000e+00 : f32
    %30 = vector.broadcast %cst_22 : f32 to vector<1x1xf32>
    %31 = arith.divf %29, %30 : vector<1x1xf32>
    %32 = vector.broadcast %31 : vector<1x1xf32> to vector<1x8xf32>
    %33 = arith.subf %27, %32 : vector<1x8xf32>
    %34 = arith.mulf %33, %33 : vector<1x8xf32>
    %cst_23 = arith.constant dense<0.000000e+00> : vector<1xf32>
    %35 = vector.multi_reduction <add>, %34, %cst_23 [1] : vector<1x8xf32> to vector<1xf32>
    %36 = vector.shape_cast %35 : vector<1xf32> to vector<1x1xf32>
    %cst_24 = arith.constant 8.000000e+00 : f32
    %37 = vector.broadcast %cst_24 : f32 to vector<1x1xf32>
    %38 = arith.divf %36, %37 : vector<1x1xf32>
    %39 = vector.broadcast %31 : vector<1x1xf32> to vector<1x8xf32>
    %40 = arith.subf %27, %39 : vector<1x8xf32>
    %cst_25 = arith.constant 9.99999974E-6 : f32
    %41 = vector.broadcast %cst_25 : f32 to vector<1x1xf32>
    %42 = arith.addf %38, %41 : vector<1x1xf32>
    %43 = math.rsqrt %42 : vector<1x1xf32>
    %44 = vector.broadcast %43 : vector<1x1xf32> to vector<1x8xf32>
    %45 = arith.mulf %40, %44 : vector<1x8xf32>
    %46 = arith.mulf %45, %22 : vector<1x8xf32>
    %47 = arith.addf %46, %23 : vector<1x8xf32>
    %cst_26 = arith.constant 0.000000e+00 : f32
    %48 = vector.broadcast %cst_26 : f32 to vector<1x8xf32>
    %49 = arith.maximumf %47, %48 : vector<1x8xf32>
    %cst_27 = arith.constant dense<0.000000e+00> : vector<1x4xf32>
    %50 = tpu.matmul %49, %24, %cst_27 {dimension_numbers = #tpu.dot_dimension_numbers<[1], [1], [0], [0], [0, 0, 1, 0], [], []>, precision = #tpu.contract_precision<fp32>} : vector<1x8xf32>, vector<4x8xf32>, vector<1x4xf32> -> vector<1x4xf32>
    %51 = arith.addf %50, %25 : vector<1x4xf32>
    %52 = vector.shape_cast %51 : vector<1x4xf32> to vector<1x4x1xf32>
    %53 = vector.broadcast %52 : vector<1x4x1xf32> to vector<1x4x256xf32>
    %54 = arith.addf %0, %53 : vector<1x4x256xf32>
    %c0_28 = arith.constant 0 : index
    %c0_29 = arith.constant 0 : index
    %c0_30 = arith.constant 0 : index
    %55 = vector.load %arg10[%c0_28, %c0_29, %c0_30] : memref<1x4x256xf32, #tpu.memory_space<vmem>>, vector<1x4x256xf32>
    tpu.vector_store %arg10[%c0_28, %c0_29, %c0_30], %54 {strides = array<i32>} : memref<1x4x256xf32, #tpu.memory_space<vmem>>, vector<1x4x256xf32>,
    return
  }
  func.func @transform_0(%arg0: i32) -> (i32, i32, i32) {
    %c0_i32 = arith.constant 0 : i32
    %c0_i32_0 = arith.constant 0 : i32
    %c0_i32_1 = arith.constant 0 : i32
    return %arg0, %c0_i32, %c0_i32_0 : i32, i32, i32
  }
  func.func @transform_1(%arg0: i32) -> (i32, i32) {
    %c0_i32 = arith.constant 0 : i32
    %c0_i32_0 = arith.constant 0 : i32
    %c0_i32_1 = arith.constant 0 : i32
    return %c0_i32, %c0_i32_0 : i32, i32
  }
  func.func @transform_2(%arg0: i32) -> i32 {
    %c0_i32 = arith.constant 0 : i32
    %c0_i32_0 = arith.constant 0 : i32
    return %c0_i32 : i32
  }
  func.func @transform_3(%arg0: i32) -> (i32, i32) {
    %c0_i32 = arith.constant 0 : i32
    %c0_i32_0 = arith.constant 0 : i32
    %c0_i32_1 = arith.constant 0 : i32
    return %c0_i32, %c0_i32_0 : i32, i32
  }
  func.func @transform_4(%arg0: i32) -> (i32, i32) {
    %c0_i32 = arith.constant 0 : i32
    %c0_i32_0 = arith.constant 0 : i32
    %c0_i32_1 = arith.constant 0 : i32
    return %c0_i32, %c0_i32_0 : i32, i32
  }
  func.func @transform_5(%arg0: i32) -> (i32, i32) {
    %c0_i32 = arith.constant 0 : i32
    %c0_i32_0 = arith.constant 0 : i32
    %c0_i32_1 = arith.constant 0 : i32
    return %c0_i32, %c0_i32_0 : i32, i32
  }
  func.func @transform_6(%arg0: i32) -> (i32, i32) {
    %c0_i32 = arith.constant 0 : i32
    %c0_i32_0 = arith.constant 0 : i32
    %c0_i32_1 = arith.constant 0 : i32
    return %c0_i32, %c0_i32_0 : i32, i32
  }
  func.func @transform_7(%arg0: i32) -> (i32, i32) {
    %c0_i32 = arith.constant 0 : i32
    %c0_i32_0 = arith.constant 0 : i32
    %c0_i32_1 = arith.constant 0 : i32
    return %c0_i32, %c0_i32_0 : i32, i32
  }
  func.func @transform_8(%arg0: i32) -> (i32, i32) {
    %c0_i32 = arith.constant 0 : i32
    %c0_i32_0 = arith.constant 0 : i32
    %c0_i32_1 = arith.constant 0 : i32
    return %c0_i32, %c0_i32_0 : i32, i32
  }
  func.func @transform_9(%arg0: i32) -> (i32, i32, i32) {
    %c0_i32 = arith.constant 0 : i32
    %c0_i32_0 = arith.constant 0 : i32
    %c0_i32_1 = arith.constant 0 : i32
    return %arg0, %c0_i32, %c0_i32_0 : i32, i32, i32
  }
}

</mosaic_0001>

<llo_original>
// kernel: tpu_custom_call.1
$region0: #{tpu_custom_call.1}
  #allocation0 [shape = 'u32[]', space=smem, size = 0x4, offset = 0x4, fixed_abs, tag = 'smem constant byte address 0x4 - core index']
  #allocation1 [shape = 'u32[72,128]{1,0:T(1,128)}', space=vmem, size = 0x9000, scoped, tag = 'internal scratch']
  #allocation2 [shape = 'f32[1]{0:T(128)S(6)}', space=smem, size = 0x200, scoped, tag = 'scoped memory for tpu_custom_call.1']
  %s0 = inlined_call_operand.hbm [shape: f32[2,4,256], index: 0, kind: input, shape index: {}]
  %s1 = inlined_call_operand.vmem [shape: f32[1,4], index: 1, kind: input, shape index: {}]
  %s2 = inlined_call_operand.<no memory space> [shape: f32[1], index: 2, kind: input, shape index: {}]
  %s3 = inlined_call_operand.vmem [shape: f32[8,4], index: 3, kind: input, shape index: {}]
  %s4 = inlined_call_operand.vmem [shape: f32[1,8], index: 4, kind: input, shape index: {}]
  %s5 = inlined_call_operand.vmem [shape: f32[1,8], index: 5, kind: input, shape index: {}]
  %s6 = inlined_call_operand.vmem [shape: f32[1,8], index: 6, kind: input, shape index: {}]
  %s7 = inlined_call_operand.vmem [shape: f32[4,8], index: 7, kind: input, shape index: {}]
  %s8 = inlined_call_operand.vmem [shape: f32[1,4], index: 8, kind: input, shape index: {}]
  %s9 = inlined_call_operand.hbm [shape: f32[2,4,256], index: 9, kind: output, shape index: {}]
  %s10 = sld [smem:[#allocation0]]
  $region73: #{tpu_custom_call.1} parent=0
    _
  %s12 = ssub.s32 1, %s10
  %s13 = scalar_select 0, %s12, %s10
  %14 = sst [smem:[#allocation2]] %s2
  $region1: #{tpu_custom_call.1} parent=0
    #allocation3 [shape = 'u8[8192]{0}', space=vmem, size = 0x2000, scoped, tag = 'input window, operand 0']
    #allocation4 [shape = 's32[2]{0}', space=sflag, size = 0x8, scoped, tag = 'scoped memory for tpu_custom_call.1']
    #allocation5 [shape = 's32[2]{0}', space=sflag, size = 0x8, scoped, tag = 'scoped memory for tpu_custom_call.1']
    #allocation6 [shape = 'u8[8192]{0}', space=vmem, size = 0x2000, scoped, tag = 'output window, operand 0']
    %15 = vsyncpa [#allocation4], 0
    %s16 = scalar_lea.sflag [#allocation4], 1
    %17 = vsyncpa %s16, 0
    %18 = vsyncpa [#allocation5], 0
    %s19 = scalar_lea.sflag [#allocation5], 1
    %20 = vsyncpa %s19, 0
    loop: start=0, step=1, limit=4
    $region2: #{tpu_custom_call.1} parent=1 // loop_pre_header
      _
    $region3: #{tpu_custom_call.1} parent=1 // loop_header
      %s22 = sphi 0, %s26
      %p23 = scmp.ge.s32.totalorder %s22, 4
      %s32 = sphi 0, %s34
      %s35 = sphi 0, %s32
      %s36 = sphi 0, %s35
      %s52 = sphi 0, %s36
      %s56 = sphi 0, %s56
      %s58 = sphi 0, %s56
      %s59 = sphi 0, %s58
      %s73 = sphi 0, %s59
      %s77 = sphi 0, %s77
      %s79 = sphi 0, %s77
      %s80 = sphi 0, %s79
      %s94 = sphi 0, %s80
      %s98 = sphi 0, %s98
      %s100 = sphi 0, %s98
      %s101 = sphi 0, %s100
      %s115 = sphi 0, %s101
      %s119 = sphi 0, %s119
      %s121 = sphi 0, %s119
      %s122 = sphi 0, %s121
      %s136 = sphi 0, %s122
      %s140 = sphi 0, %s140
      %s142 = sphi 0, %s140
      %s143 = sphi 0, %s142
      %s157 = sphi 0, %s143
      %s161 = sphi 0, %s161
      %s163 = sphi 0, %s161
      %s164 = sphi 0, %s163
      %s178 = sphi 0, %s164
      %s182 = sphi 0, %s182
      %s184 = sphi 0, %s182
      %s185 = sphi 0, %s184
      %s199 = sphi 0, %s185
      %s203 = sphi 0, %s203
      %s205 = sphi 0, %s203
      %s206 = sphi 0, %s205
      %s220 = sphi 0, %s206
      %s226 = sphi 0, %s228
      %s229 = sphi 0, %s226
      %s230 = sphi 0, %s229
      %s246 = sphi 0, %s230
    $region4: #{tpu_custom_call.1} parent=1 // loop_header_branch
      %25 = sbr.rel (%p23) target = $region8
    $region5: #{tpu_custom_call.1} parent=1 // loop_body
      %s27 = ssub.s32 %s22, 1
      %s28 = ssub.s32 %s22, 2
      %s29 = sadd.s32 %s22, 1
      %s30 = ssub.s32 %s22, %s29
      %p31 = scmp.eq.s32.totalorder %s30, 0
      %s33 = sadd.s32 %s32, 1
      %s34 = scalar_select %p31, %s32, %s33
      %p37 = pneg %p31
      %p38 = scmp.eq.s32.totalorder %s22, 1
      %p39 = por %p37, %p38
      %p40 = scmp.ne.s32.totalorder %s32, %s35
      %p41 = scmp.eq.s32.totalorder %s22, 0
      %p42 = por %p40, %p41
      %p43 = scmp.ne.s32.totalorder %s32, %s35
      %p44 = scmp.eq.s32.totalorder %s27, 1
      %p45 = por %p43, %p44
      %p46 = scmp.ne.s32.totalorder %s35, %s36
      %p47 = scmp.eq.s32.totalorder %s27, 0
      %p48 = por %p46, %p47
      %p49 = scmp.ne.s32.totalorder %s35, %s36
      %p50 = scmp.eq.s32.totalorder %s28, 1
      %p51 = por %p49, %p50
      %p53 = scmp.ne.s32.totalorder %s36, %s52
      %p54 = scmp.eq.s32.totalorder %s28, 0
      %p55 = por %p53, %p54
      %s57 = sadd.s32 %s56, 1
      %p60 = scmp.eq.s32.totalorder %s22, 1
      %p61 = scmp.ne.s32.totalorder %s56, %s58
      %p62 = scmp.eq.s32.totalorder %s22, 0
      %p63 = por %p61, %p62
      %p64 = scmp.ne.s32.totalorder %s56, %s58
      %p65 = scmp.eq.s32.totalorder %s27, 1
      %p66 = por %p64, %p65
      %p67 = scmp.ne.s32.totalorder %s58, %s59
      %p68 = scmp.eq.s32.totalorder %s27, 0
      %p69 = por %p67, %p68
      %p70 = scmp.ne.s32.totalorder %s58, %s59
      %p71 = scmp.eq.s32.totalorder %s28, 1
      %p72 = por %p70, %p71
      %p74 = scmp.ne.s32.totalorder %s59, %s73
      %p75 = scmp.eq.s32.totalorder %s28, 0
      %p76 = por %p74, %p75
      %s78 = sadd.s32 %s77, 1
      %p81 = scmp.eq.s32.totalorder %s22, 1
      %p82 = scmp.ne.s32.totalorder %s77, %s79
      %p83 = scmp.eq.s32.totalorder %s22, 0
      %p84 = por %p82, %p83
      %p85 = scmp.ne.s32.totalorder %s77, %s79
      %p86 = scmp.eq.s32.totalorder %s27, 1
      %p87 = por %p85, %p86
      %p88 = scmp.ne.s32.totalorder %s79, %s80
      %p89 = scmp.eq.s32.totalorder %s27, 0
      %p90 = por %p88, %p89
      %p91 = scmp.ne.s32.totalorder %s79, %s80
      %p92 = scmp.eq.s32.totalorder %s28, 1
      %p93 = por %p91, %p92
      %p95 = scmp.ne.s32.totalorder %s80, %s94
      %p96 = scmp.eq.s32.totalorder %s28, 0
      %p97 = por %p95, %p96
      %s99 = sadd.s32 %s98, 1
      %p102 = scmp.eq.s32.totalorder %s22, 1
      %p103 = scmp.ne.s32.totalorder %s98, %s100
      %p104 = scmp.eq.s32.totalorder %s22, 0
      %p105 = por %p103, %p104
      %p106 = scmp.ne.s32.totalorder %s98, %s100
      %p107 = scmp.eq.s32.totalorder %s27, 1
      %p108 = por %p106, %p107
      %p109 = scmp.ne.s32.totalorder %s100, %s101
      %p110 = scmp.eq.s32.totalorder %s27, 0
      %p111 = por %p109, %p110
      %p112 = scmp.ne.s32.totalorder %s100, %s101
      %p113 = scmp.eq.s32.totalorder %s28, 1
      %p114 = por %p112, %p113
      %p116 = scmp.ne.s32.totalorder %s101, %s115
      %p117 = scmp.eq.s32.totalorder %s28, 0
      %p118 = por %p116, %p117
      %s120 = sadd.s32 %s119, 1
      %p123 = scmp.eq.s32.totalorder %s22, 1
      %p124 = scmp.ne.s32.totalorder %s119, %s121
      %p125 = scmp.eq.s32.totalorder %s22, 0
      %p126 = por %p124, %p125
      %p127 = scmp.ne.s32.totalorder %s119, %s121
      %p128 = scmp.eq.s32.totalorder %s27, 1
      %p129 = por %p127, %p128
      %p130 = scmp.ne.s32.totalorder %s121, %s122
      %p131 = scmp.eq.s32.totalorder %s27, 0
      %p132 = por %p130, %p131
      %p133 = scmp.ne.s32.totalorder %s121, %s122
      %p134 = scmp.eq.s32.totalorder %s28, 1
      %p135 = por %p133, %p134
      %p137 = scmp.ne.s32.totalorder %s122, %s136
      %p138 = scmp.eq.s32.totalorder %s28, 0
      %p139 = por %p137, %p138
      %s141 = sadd.s32 %s140, 1
      %p144 = scmp.eq.s32.totalorder %s22, 1
      %p145 = scmp.ne.s32.totalorder %s140, %s142
      %p146 = scmp.eq.s32.totalorder %s22, 0
      %p147 = por %p145, %p146
      %p148 = scmp.ne.s32.totalorder %s140, %s142
      %p149 = scmp.eq.s32.totalorder %s27, 1
      %p150 = por %p148, %p149
      %p151 = scmp.ne.s32.totalorder %s142, %s143
      %p152 = scmp.eq.s32.totalorder %s27, 0
      %p153 = por %p151, %p152
      %p154 = scmp.ne.s32.totalorder %s142, %s143
      %p155 = scmp.eq.s32.totalorder %s28, 1
      %p156 = por %p154, %p155
      %p158 = scmp.ne.s32.totalorder %s143, %s157
      %p159 = scmp.eq.s32.totalorder %s28, 0
      %p160 = por %p158, %p159
      %s162 = sadd.s32 %s161, 1
      %p165 = scmp.eq.s32.totalorder %s22, 1
      %p166 = scmp.ne.s32.totalorder %s161, %s163
      %p167 = scmp.eq.s32.totalorder %s22, 0
      %p168 = por %p166, %p167
      %p169 = scmp.ne.s32.totalorder %s161, %s163
      %p170 = scmp.eq.s32.totalorder %s27, 1
      %p171 = por %p169, %p170
      %p172 = scmp.ne.s32.totalorder %s163, %s164
      %p173 = scmp.eq.s32.totalorder %s27, 0
      %p174 = por %p172, %p173
      %p175 = scmp.ne.s32.totalorder %s163, %s164
      %p176 = scmp.eq.s32.totalorder %s28, 1
      %p177 = por %p175, %p176
      %p179 = scmp.ne.s32.totalorder %s164, %s178
      %p180 = scmp.eq.s32.totalorder %s28, 0
      %p181 = por %p179, %p180
      %s183 = sadd.s32 %s182, 1
      %p186 = scmp.eq.s32.totalorder %s22, 1
      %p187 = scmp.ne.s32.totalorder %s182, %s184
      %p188 = scmp.eq.s32.totalorder %s22, 0
      %p189 = por %p187, %p188
      %p190 = scmp.ne.s32.totalorder %s182, %s184
      %p191 = scmp.eq.s32.totalorder %s27, 1
      %p192 = por %p190, %p191
      %p193 = scmp.ne.s32.totalorder %s184, %s185
      %p194 = scmp.eq.s32.totalorder %s27, 0
      %p195 = por %p193, %p194
      %p196 = scmp.ne.s32.totalorder %s184, %s185
      %p197 = scmp.eq.s32.totalorder %s28, 1
      %p198 = por %p196, %p197
      %p200 = scmp.ne.s32.totalorder %s185, %s199
      %p201 = scmp.eq.s32.totalorder %s28, 0
      %p202 = por %p200, %p201
      %s204 = sadd.s32 %s203, 1
      %p207 = scmp.eq.s32.totalorder %s22, 1
      %p208 = scmp.ne.s32.totalorder %s203, %s205
      %p209 = scmp.eq.s32.totalorder %s22, 0
      %p210 = por %p208, %p209
      %p211 = scmp.ne.s32.totalorder %s203, %s205
      %p212 = scmp.eq.s32.totalorder %s27, 1
      %p213 = por %p211, %p212
      %p214 = scmp.ne.s32.totalorder %s205, %s206
      %p215 = scmp.eq.s32.totalorder %s27, 0
      %p216 = por %p214, %p215
      %p217 = scmp.ne.s32.totalorder %s205, %s206
      %p218 = scmp.eq.s32.totalorder %s28, 1
      %p219 = por %p217, %p218
      %p221 = scmp.ne.s32.totalorder %s206, %s220
      %p222 = scmp.eq.s32.totalorder %s28, 0
      %p223 = por %p221, %p222
      %s224 = ssub.s32 %s22, %s29
      %p225 = scmp.eq.s32.totalorder %s224, 0
      %s227 = sadd.s32 %s226, 1
      %s228 = scalar_select %p225, %s226, %s227
      %p231 = pneg %p225
      %p232 = scmp.eq.s32.totalorder %s22, 1
      %p233 = por %p231, %p232
      %p234 = scmp.ne.s32.totalorder %s226, %s229
      %p235 = scmp.eq.s32.totalorder %s22, 0
      %p236 = por %p234, %p235
      %p237 = scmp.ne.s32.totalorder %s226, %s229
      %p238 = scmp.eq.s32.totalorder %s27, 1
      %p239 = por %p237, %p238
      %p240 = scmp.ne.s32.totalorder %s229, %s230
      %p241 = scmp.eq.s32.totalorder %s27, 0
      %p242 = por %p240, %p241
      %p243 = scmp.ne.s32.totalorder %s229, %s230
      %p244 = scmp.eq.s32.totalorder %s28, 1
      %p245 = por %p243, %p244
      %p247 = scmp.ne.s32.totalorder %s230, %s246
      %p248 = scmp.eq.s32.totalorder %s28, 0
      %p249 = por %p247, %p248
      %p250 = scmp.le.s32.totalorder 1, %s22
      %p251 = scmp.lt.s32.totalorder %s22, 3
      %p252 = pnand %p250, %p251
      %p253 = pneg %p252
      // Predicated region
      $region9: #{tpu_custom_call.1} parent=5 // pred_check
        _
      $region10: #{tpu_custom_call.1} parent=5 // pred_check_branch
        %255 = sbr.rel (%p252) target = $region12
      $region11: #{tpu_custom_call.1} parent=5 // pred_region
        %s256 = ssub.s32 %s22, 1
        // Predicated region
        $region13: #{tpu_custom_call.1} parent=11 // pred_check
          %p257 = pneg %p69
        $region14: #{tpu_custom_call.1} parent=11 // pred_check_branch
          %259 = sbr.rel (%p257) target = $region16
        $region15: #{tpu_custom_call.1} parent=11 // pred_region
          _
        $region16: #{tpu_custom_call.1} parent=11 // pred_fallthru
          _
        // Predicated region
        $region17: #{tpu_custom_call.1} parent=11 // pred_check
          %p260 = pneg %p90
        $region18: #{tpu_custom_call.1} parent=11 // pred_check_branch
          %262 = sbr.rel (%p260) target = $region20
        $region19: #{tpu_custom_call.1} parent=11 // pred_region
          _
        $region20: #{tpu_custom_call.1} parent=11 // pred_fallthru
          _
        // Predicated region
        $region21: #{tpu_custom_call.1} parent=11 // pred_check
          %p263 = pneg %p111
        $region22: #{tpu_custom_call.1} parent=11 // pred_check_branch
          %265 = sbr.rel (%p263) target = $region24
        $region23: #{tpu_custom_call.1} parent=11 // pred_region
          _
        $region24: #{tpu_custom_call.1} parent=11 // pred_fallthru
          _
        // Predicated region
        $region25: #{tpu_custom_call.1} parent=11 // pred_check
          %p266 = pneg %p132
        $region26: #{tpu_custom_call.1} parent=11 // pred_check_branch
          %268 = sbr.rel (%p266) target = $region28
        $region27: #{tpu_custom_call.1} parent=11 // pred_region
          _
        $region28: #{tpu_custom_call.1} parent=11 // pred_fallthru
          _
        // Predicated region
        $region29: #{tpu_custom_call.1} parent=11 // pred_check
          %p269 = pneg %p153
        $region30: #{tpu_custom_call.1} parent=11 // pred_check_branch
          %271 = sbr.rel (%p269) target = $region32
        $region31: #{tpu_custom_call.1} parent=11 // pred_region
          _
        $region32: #{tpu_custom_call.1} parent=11 // pred_fallthru
          _
        // Predicated region
        $region33: #{tpu_custom_call.1} parent=11 // pred_check
          %p272 = pneg %p174
        $region34: #{tpu_custom_call.1} parent=11 // pred_check_branch
          %274 = sbr.rel (%p272) target = $region36
        $region35: #{tpu_custom_call.1} parent=11 // pred_region
          _
        $region36: #{tpu_custom_call.1} parent=11 // pred_fallthru
          _
        // Predicated region
        $region37: #{tpu_custom_call.1} parent=11 // pred_check
          %p275 = pneg %p195
        $region38: #{tpu_custom_call.1} parent=11 // pred_check_branch
          %277 = sbr.rel (%p275) target = $region40
        $region39: #{tpu_custom_call.1} parent=11 // pred_region
          _
        $region40: #{tpu_custom_call.1} parent=11 // pred_fallthru
          _
        // Predicated region
        $region41: #{tpu_custom_call.1} parent=11 // pred_check
          %p278 = pneg %p216
        $region42: #{tpu_custom_call.1} parent=11 // pred_check_branch
          %280 = sbr.rel (%p278) target = $region44
        $region43: #{tpu_custom_call.1} parent=11 // pred_region
          _
        $region44: #{tpu_custom_call.1} parent=11 // pred_fallthru
          _
      $region12: #{tpu_custom_call.1} parent=5 // pred_fallthru
        _
      %p281 = scmp.lt.s32.totalorder %s22, 2
      // Predicated region
      $region45: #{tpu_custom_call.1} parent=5 // pred_check
        %p282 = pneg %p281
      $region46: #{tpu_custom_call.1} parent=5 // pred_check_branch
        %284 = sbr.rel (%p282) target = $region48
      $region47: #{tpu_custom_call.1} parent=5 // pred_region
        // Predicated region
        $region49: #{tpu_custom_call.1} parent=47 // pred_check
          %p285 = pneg %p42
        $region50: #{tpu_custom_call.1} parent=47 // pred_check_branch
          %287 = sbr.rel (%p285) target = $region52
        $region51: #{tpu_custom_call.1} parent=47 // pred_region
          %s288 = sand.u32 %s32, 1
          %s289 = scalar_lea.sflag [#allocation4], %s288
          %s290 = sand.u32 %s32, 1
          %s291 = smul.addr %s290, 8
          %s292 = scalar_lea.vmem [#allocation3], %s291
          %294 = vsyncadd %s289, 0
          %s295 = smul.addr %s22, 2
          %s296 = smul.addr %s295, 4
          %s297 = scalar_lea.hbm %s0, %s296
          %s299 = sshll.u32 %s297, 4
          %s300 = int_to_ptr.hbm [resolvable:$true] %s299
          %s301 = sshll.u32 %s292, 4
          %s302 = int_to_ptr.vmem [resolvable:$true] %s301
          %304 = dma.hbm_to_vmem [thread:$0]  %s300, 128, %s302, %s289
        $region52: #{tpu_custom_call.1} parent=47 // pred_fallthru
          _
      $region48: #{tpu_custom_call.1} parent=5 // pred_fallthru
        _
      %p305 = scmp.le.s32.totalorder 1, %s22
      %p306 = scmp.lt.s32.totalorder %s22, 3
      %p307 = pnand %p305, %p306
      %p308 = pneg %p307
      // Predicated region
      $region53: #{tpu_custom_call.1} parent=5 // pred_check
        _
      $region54: #{tpu_custom_call.1} parent=5 // pred_check_branch
        %310 = sbr.rel (%p307) target = $region56
      $region55: #{tpu_custom_call.1} parent=5 // pred_region
        %s311 = ssub.s32 %s22, 1
        %s312 = sand.u32 %s35, 1
        %s313 = scalar_lea.sflag [#allocation4], %s312
        %s314 = sand.u32 %s35, 1
        %s315 = smul.addr %s314, 8
        %s316 = scalar_lea.vmem [#allocation3], %s315
        // Predicated region
        $region57: #{tpu_custom_call.1} parent=55 // pred_check
          %p317 = pneg %p48
        $region58: #{tpu_custom_call.1} parent=55 // pred_check_branch
          %319 = sbr.rel (%p317) target = $region60
        $region59: #{tpu_custom_call.1} parent=55 // pred_region
          %321 = dma.done %s313, 128
        $region60: #{tpu_custom_call.1} parent=55 // pred_fallthru
          _
        %s322 = sand.u32 %s35, 1
        %s323 = scalar_lea.sflag [#allocation4], %s322
        %s324 = sand.u32 %s35, 1
        %s325 = smul.addr %s324, 8
        %s326 = scalar_lea.vmem [#allocation3], %s325
        %p327 = pneg %p48
        %p328 = pneg %p45
        %p329 = pneg %p69
        %p330 = pneg %p66
        %p331 = pneg %p90
        %p332 = pneg %p87
        %p333 = pneg %p111
        %p334 = pneg %p108
        %p335 = pneg %p132
        %p336 = pneg %p129
        %p337 = pneg %p153
        %p338 = pneg %p150
        %p339 = pneg %p174
        %p340 = pneg %p171
        %p341 = pneg %p195
        %p342 = pneg %p192
        %p343 = pneg %p216
        %p344 = pneg %p213
        %p345 = pneg %p242
        %p346 = pneg %p239
        %s347 = sand.u32 %s229, 1
        %s348 = scalar_lea.sflag [#allocation5], %s347
        %s349 = sand.u32 %s229, 1
        %s350 = smul.addr %s349, 8
        %s351 = scalar_lea.vmem [#allocation6], %s350
        %v352 = vld [vmem:[%s316] sm:$0xff]
        %v353 = vld [vmem:[%s1] sm:$0x1]
        %s354 = sld [smem:[#allocation2]]
        %v355 = vstv %s354
        %357 = vst [vmem:[#allocation1] ss:$2 sm:$0xff] %v352
        %v358 = vld.sshfl [vmem:[#allocation1] sm:$0xff pattern:$0x75316420]
        %v359 = vld.sshfl [vmem:[#allocation1 + $0x8] sm:$0xff pattern:$0x75316420]
        %vm360 = vcmask 31744
        %v362 = vsel %vm360, %v353, 0
        %vm364 = vcmask 1043456
        %v365 = vsel %vm364, %v358, 0
        %v367 = vsel %vm364, %v359, 0
        %369 = vmatpush.msra.mxu0 0.0
        %370 = vmatpush.msra.mxu0 0.0
        %371 = vmatpush.msra.mxu0 0.0
        %372 = vmatpush.msra.mxu0 0.0
        %373 = vmatpush.msra.mxu0 0.0
        %374 = vmatpush.msra.mxu0 0.0
        %375 = vmatpush.msra.mxu0 0.0
        %376 = vmatpush.msra.mxu0 0.0
        %377 = vmatpush.msra.mxu0 0.0
        %378 = vmatpush.msra.mxu0 0.0
        %379 = vmatpush.msra.mxu0 0.0
        %380 = vmatpush.msra.mxu0 0.0
        %381 = vmatpush.msra.mxu0 0.0
        %382 = vmatpush.msra.mxu0 0.0
        %383 = vmatpush.msra.mxu0 0.0
        %384 = vmatpush.msra.mxu0 %v365
        %385 = vmatmul.f32.gmra.mxu0 %v362
        %v386 = vpop.f32.mrf.mxu0
        %v387 = vadd.f32 %v355, %v386
        %388 = vdwg.mxu0
        %389 = vmatpush.msra.mxu0 0.0
        %390 = vmatpush.msra.mxu0 0.0
        %391 = vmatpush.msra.mxu0 0.0
        %392 = vmatpush.msra.mxu0 0.0
        %393 = vmatpush.msra.mxu0 0.0
        %394 = vmatpush.msra.mxu0 0.0
        %395 = vmatpush.msra.mxu0 0.0
        %396 = vmatpush.msra.mxu0 0.0
        %397 = vmatpush.msra.mxu0 0.0
        %398 = vmatpush.msra.mxu0 0.0
        %399 = vmatpush.msra.mxu0 0.0
        %400 = vmatpush.msra.mxu0 0.0
        %401 = vmatpush.msra.mxu0 0.0
        %402 = vmatpush.msra.mxu0 0.0
        %403 = vmatpush.msra.mxu0 0.0
        %404 = vmatpush.msra.mxu0 %v367
        %405 = vmatmul.f32.gmra.mxu0 %v362
        %v406 = vpop.f32.mrf.mxu0
        %v407 = vadd.f32 %v355, %v406
        %408 = vdwg.mxu0
        %vm409 = vcmask 1040384
        %v410 = vsel %vm409, %v387, -inf
        %v411 = vsel %vm409, %v407, -inf
        %v412 = vmax.f32 %v410, %v411
        %413 = vmax.xlane.f32.xlu0 %v412
        %v414 = vpop.xlane.xlu0 %413
        %v415 = vsub.f32 %v387, %v414
        %v416 = vsub.f32 %v407, %v414
        %v417 = vmul.f32 %v415, 1.442695
        %v418 = vpow.pop %v417
        %v419 = vmul.f32 %v416, 1.442695
        %v420 = vpow.pop %v419
        %v421 = vsel %vm409, %v418, 0.0
        %v422 = vsel %vm409, %v420, 0.0
        %v423 = vadd.f32 %v421, %v422
        %424 = vadd.xlane.f32.xlu0 %v423
        %v425 = vpop.xlane.xlu0 %424
        %426 = vst [vmem:[#allocation1] ss:$2 sm:$0xff] %v352
        %v427 = vld.sshfl [vmem:[#allocation1] sm:$0xff pattern:$0x75316420]
        %v428 = vld.sshfl [vmem:[#allocation1 + $0x8] sm:$0xff pattern:$0x75316420]
        %431 = vmatpush.xpose.msra.mxu0 0.0
        %432 = vmatpush.xpose.msra.mxu0 0.0
        %433 = vmatpush.xpose.msra.mxu0 0.0
        %434 = vmatpush.xpose.msra.mxu0 0.0
        %435 = vmatpush.xpose.msra.mxu0 0.0
        %436 = vmatpush.xpose.msra.mxu0 0.0
        %437 = vmatpush.xpose.msra.mxu0 0.0
        %438 = vmatpush.xpose.msra.mxu0 0.0
        %439 = vmatpush.xpose.msra.mxu0 0.0
        %440 = vmatpush.xpose.msra.mxu0 0.0
        %441 = vmatpush.xpose.msra.mxu0 0.0
        %442 = vmatpush.xpose.msra.mxu0 0.0
        %443 = vmatpush.xpose.msra.mxu0 0.0
        %444 = vmatpush.xpose.msra.mxu0 0.0
        %445 = vmatpush.xpose.msra.mxu0 0.0
        %446 = vmatpush.xpose.msra.mxu0 %v427
        %447 = vmatmul.f32.gmra.mxu0 %v418
        %v448 = vpop.f32.mrf.mxu0
        %v449 = vadd.f32 0.0, %v448
        %450 = vdwg.mxu0
        %451 = vmatpush.xpose.msra.mxu0 0.0
        %452 = vmatpush.xpose.msra.mxu0 0.0
        %453 = vmatpush.xpose.msra.mxu0 0.0
        %454 = vmatpush.xpose.msra.mxu0 0.0
        %455 = vmatpush.xpose.msra.mxu0 0.0
        %456 = vmatpush.xpose.msra.mxu0 0.0
        %457 = vmatpush.xpose.msra.mxu0 0.0
        %458 = vmatpush.xpose.msra.mxu0 0.0
        %459 = vmatpush.xpose.msra.mxu0 0.0
        %460 = vmatpush.xpose.msra.mxu0 0.0
        %461 = vmatpush.xpose.msra.mxu0 0.0
        %462 = vmatpush.xpose.msra.mxu0 0.0
        %463 = vmatpush.xpose.msra.mxu0 0.0
        %464 = vmatpush.xpose.msra.mxu0 0.0
        %465 = vmatpush.xpose.msra.mxu0 0.0
        %466 = vmatpush.xpose.msra.mxu0 %v428
        %467 = vmatmul.f32.gmra.mxu0 %v420
        %v468 = vpop.f32.mrf.mxu0
        %v469 = vadd.f32 %v449, %v468
        %470 = vdwg.mxu0
        %v471 = vrcp.pop %v425
        %v472 = vmul.f32 %v469, %v471
        %v473 = vld [vmem:[%s3] sm:$0xff]
        %v474 = vld [vmem:[%s4] sm:$0x1]
        %v475 = vld [vmem:[%s5] sm:$0x1]
        %v476 = vld [vmem:[%s6] sm:$0x1]
        %v477 = vld [vmem:[%s7] sm:$0xf]
        %v478 = vld [vmem:[%s8] sm:$0x1]
        %v480 = vsel %vm360, %v472, 0
        %v483 = vsel %vm360, %v473, 0
        %485 = vmatpush.xpose.msra.mxu0 0.0
        %486 = vmatpush.xpose.msra.mxu0 0.0
        %487 = vmatpush.xpose.msra.mxu0 0.0
        %488 = vmatpush.xpose.msra.mxu0 0.0
        %489 = vmatpush.xpose.msra.mxu0 0.0
        %490 = vmatpush.xpose.msra.mxu0 0.0
        %491 = vmatpush.xpose.msra.mxu0 0.0
        %492 = vmatpush.xpose.msra.mxu0 0.0
        %493 = vmatpush.xpose.msra.mxu0 0.0
        %494 = vmatpush.xpose.msra.mxu0 0.0
        %495 = vmatpush.xpose.msra.mxu0 0.0
        %496 = vmatpush.xpose.msra.mxu0 0.0
        %497 = vmatpush.xpose.msra.mxu0 0.0
        %498 = vmatpush.xpose.msra.mxu0 0.0
        %499 = vmatpush.xpose.msra.mxu0 0.0
        %v500 = vand.u32 %v483, 4294901760
        %501 = vmatpush.xpose.msra.mxu0 %v500
        %v502 = vand.u32 %v480, 4294901760
        %v503 = vsub.f32 %v480, %v502
        %v504 = vand.u32 %v503, 4294901760
        %v505 = vsub.f32 %v503, %v504
        %v506 = vand.u32 %v505, 4294901760
        %507 = vmatmul.f32.gmra.mxu0 %v506
        %v508 = vpop.f32.mrf.mxu0
        %v509 = vadd.f32 %v474, %v508
        %510 = vdwg.mxu0
        %511 = vmatpush.xpose.msra.mxu0 0.0
        %512 = vmatpush.xpose.msra.mxu0 0.0
        %513 = vmatpush.xpose.msra.mxu0 0.0
        %514 = vmatpush.xpose.msra.mxu0 0.0
        %515 = vmatpush.xpose.msra.mxu0 0.0
        %516 = vmatpush.xpose.msra.mxu0 0.0
        %517 = vmatpush.xpose.msra.mxu0 0.0
        %518 = vmatpush.xpose.msra.mxu0 0.0
        %519 = vmatpush.xpose.msra.mxu0 0.0
        %520 = vmatpush.xpose.msra.mxu0 0.0
        %521 = vmatpush.xpose.msra.mxu0 0.0
        %522 = vmatpush.xpose.msra.mxu0 0.0
        %523 = vmatpush.xpose.msra.mxu0 0.0
        %524 = vmatpush.xpose.msra.mxu0 0.0
        %525 = vmatpush.xpose.msra.mxu0 0.0
        %v526 = vand.u32 %v483, 4294901760
        %v527 = vsub.f32 %v483, %v526
        %v528 = vand.u32 %v527, 4294901760
        %v529 = vsub.f32 %v527, %v528
        %v530 = vand.u32 %v529, 4294901760
        %531 = vmatpush.xpose.msra.mxu0 %v530
        %v532 = vand.u32 %v480, 4294901760
        %533 = vmatmul.f32.gmra.mxu0 %v532
        %v534 = vpop.f32.mrf.mxu0
        %v535 = vadd.f32 %v509, %v534
        %536 = vdwg.mxu0
        %537 = vmatpush.xpose.msra.mxu0 0.0
        %538 = vmatpush.xpose.msra.mxu0 0.0
        %539 = vmatpush.xpose.msra.mxu0 0.0
        %540 = vmatpush.xpose.msra.mxu0 0.0
        %541 = vmatpush.xpose.msra.mxu0 0.0
        %542 = vmatpush.xpose.msra.mxu0 0.0
        %543 = vmatpush.xpose.msra.mxu0 0.0
        %544 = vmatpush.xpose.msra.mxu0 0.0
        %545 = vmatpush.xpose.msra.mxu0 0.0
        %546 = vmatpush.xpose.msra.mxu0 0.0
        %547 = vmatpush.xpose.msra.mxu0 0.0
        %548 = vmatpush.xpose.msra.mxu0 0.0
        %549 = vmatpush.xpose.msra.mxu0 0.0
        %550 = vmatpush.xpose.msra.mxu0 0.0
        %551 = vmatpush.xpose.msra.mxu0 0.0
        %v552 = vand.u32 %v483, 4294901760
        %v553 = vsub.f32 %v483, %v552
        %554 = vmatpush.xpose.msra.mxu0 %v553
        %v555 = vand.u32 %v480, 4294901760
        %v556 = vsub.f32 %v480, %v555
        %557 = vmatmul.f32.gmra.mxu0 %v556
        %v558 = vpop.f32.mrf.mxu0
        %v559 = vadd.f32 %v535, %v558
        %560 = vdwg.mxu0
        %561 = vmatpush.xpose.msra.mxu0 0.0
        %562 = vmatpush.xpose.msra.mxu0 0.0
        %563 = vmatpush.xpose.msra.mxu0 0.0
        %564 = vmatpush.xpose.msra.mxu0 0.0
        %565 = vmatpush.xpose.msra.mxu0 0.0
        %566 = vmatpush.xpose.msra.mxu0 0.0
        %567 = vmatpush.xpose.msra.mxu0 0.0
        %568 = vmatpush.xpose.msra.mxu0 0.0
        %569 = vmatpush.xpose.msra.mxu0 0.0
        %570 = vmatpush.xpose.msra.mxu0 0.0
        %571 = vmatpush.xpose.msra.mxu0 0.0
        %572 = vmatpush.xpose.msra.mxu0 0.0
        %573 = vmatpush.xpose.msra.mxu0 0.0
        %574 = vmatpush.xpose.msra.mxu0 0.0
        %575 = vmatpush.xpose.msra.mxu0 0.0
        %v576 = vand.u32 %v483, 4294901760
        %577 = vmatpush.xpose.msra.mxu0 %v576
        %v578 = vand.u32 %v480, 4294901760
        %v579 = vsub.f32 %v480, %v578
        %v580 = vand.u32 %v579, 4294901760
        %581 = vmatmul.f32.gmra.mxu0 %v580
        %v582 = vpop.f32.mrf.mxu0
        %v583 = vadd.f32 %v559, %v582
        %584 = vdwg.mxu0
        %585 = vmatpush.xpose.msra.mxu0 0.0
        %586 = vmatpush.xpose.msra.mxu0 0.0
        %587 = vmatpush.xpose.msra.mxu0 0.0
        %588 = vmatpush.xpose.msra.mxu0 0.0
        %589 = vmatpush.xpose.msra.mxu0 0.0
        %590 = vmatpush.xpose.msra.mxu0 0.0
        %591 = vmatpush.xpose.msra.mxu0 0.0
        %592 = vmatpush.xpose.msra.mxu0 0.0
        %593 = vmatpush.xpose.msra.mxu0 0.0
        %594 = vmatpush.xpose.msra.mxu0 0.0
        %595 = vmatpush.xpose.msra.mxu0 0.0
        %596 = vmatpush.xpose.msra.mxu0 0.0
        %597 = vmatpush.xpose.msra.mxu0 0.0
        %598 = vmatpush.xpose.msra.mxu0 0.0
        %599 = vmatpush.xpose.msra.mxu0 0.0
        %v600 = vand.u32 %v483, 4294901760
        %v601 = vsub.f32 %v483, %v600
        %v602 = vand.u32 %v601, 4294901760
        %603 = vmatpush.xpose.msra.mxu0 %v602
        %v604 = vand.u32 %v480, 4294901760
        %605 = vmatmul.f32.gmra.mxu0 %v604
        %v606 = vpop.f32.mrf.mxu0
        %v607 = vadd.f32 %v583, %v606
        %608 = vdwg.mxu0
        %609 = vmatpush.xpose.msra.mxu0 0.0
        %610 = vmatpush.xpose.msra.mxu0 0.0
        %611 = vmatpush.xpose.msra.mxu0 0.0
        %612 = vmatpush.xpose.msra.mxu0 0.0
        %613 = vmatpush.xpose.msra.mxu0 0.0
        %614 = vmatpush.xpose.msra.mxu0 0.0
        %615 = vmatpush.xpose.msra.mxu0 0.0
        %616 = vmatpush.xpose.msra.mxu0 0.0
        %617 = vmatpush.xpose.msra.mxu0 0.0
        %618 = vmatpush.xpose.msra.mxu0 0.0
        %619 = vmatpush.xpose.msra.mxu0 0.0
        %620 = vmatpush.xpose.msra.mxu0 0.0
        %621 = vmatpush.xpose.msra.mxu0 0.0
        %622 = vmatpush.xpose.msra.mxu0 0.0
        %623 = vmatpush.xpose.msra.mxu0 0.0
        %v624 = vand.u32 %v483, 4294901760
        %625 = vmatpush.xpose.msra.mxu0 %v624
        %v626 = vand.u32 %v480, 4294901760
        %627 = vmatmul.f32.gmra.mxu0 %v626
        %v628 = vpop.f32.mrf.mxu0
        %v629 = vadd.f32 %v607, %v628
        %630 = vdwg.mxu0
        %vm631 = vcmask 57344
        %v632 = vsel %vm631, %v629, 0.0
        %633 = vadd.xlane.f32.xlu0 %v632
        %v634 = vpop.xlane.xlu0 %633
        %v635 = vrcp.pop 8.0
        %v636 = vmul.f32 8.0, %v635
        %v637 = vsub.f32 1.0, %v636
        %v638 = vmul.f32 %v635, %v637
        %v639 = vadd.f32 %v635, %v638
        %vm640 = vweird.f32 %v635
        %v641 = vsel %vm640, %v635, %v639
        %v642 = vmul.f32 %v634, %v641
        %v643 = vsub.f32 %v629, %v642
        %v644 = vmul.f32 %v643, %v643
        %v645 = vsel %vm631, %v644, 0.0
        %646 = vadd.xlane.f32.xlu0 %v645
        %v647 = vpop.xlane.xlu0 %646
        %v648 = vmul.f32 %v647, %v641
        %v649 = vadd.f32 %v648, 1e-05
        %v650 = vrsqrt.pop %v649
        %v651 = vmul.f32 %v650, %v649
        %v652 = vmul.f32 %v651, %v650
        %v653 = vmul.f32 0.5, %v652
        %v654 = vsub.f32 1.5, %v653
        %v655 = vmul.f32 %v650, %v654
        %vm656 = vweird.f32 %v649
        %vm657 = vweird.f32 %v650
        %vm658 = vmor %vm656, %vm657
        %v659 = vsel %vm658, %v650, %v655
        %v660 = vmul.f32 %v643, %v659
        %v661 = vmul.f32 %v660, %v475
        %v662 = vadd.f32 %v661, %v476
        %v663 = vmax.f32 %v662, 0.0
        %vm664 = vcmask 64512
        %v666 = vsel %vm664, %v663, 0
        %v669 = vsel %vm664, %v477, 0
        %671 = vmatpush.xpose.msra.mxu0 0.0
        %672 = vmatpush.xpose.msra.mxu0 0.0
        %673 = vmatpush.xpose.msra.mxu0 0.0
        %674 = vmatpush.xpose.msra.mxu0 0.0
        %675 = vmatpush.xpose.msra.mxu0 0.0
        %676 = vmatpush.xpose.msra.mxu0 0.0
        %677 = vmatpush.xpose.msra.mxu0 0.0
        %678 = vmatpush.xpose.msra.mxu0 0.0
        %679 = vmatpush.xpose.msra.mxu0 0.0
        %680 = vmatpush.xpose.msra.mxu0 0.0
        %681 = vmatpush.xpose.msra.mxu0 0.0
        %682 = vmatpush.xpose.msra.mxu0 0.0
        %683 = vmatpush.xpose.msra.mxu0 0.0
        %684 = vmatpush.xpose.msra.mxu0 0.0
        %685 = vmatpush.xpose.msra.mxu0 0.0
        %v686 = vand.u32 %v669, 4294901760
        %687 = vmatpush.xpose.msra.mxu0 %v686
        %v688 = vand.u32 %v666, 4294901760
        %v689 = vsub.f32 %v666, %v688
        %v690 = vand.u32 %v689, 4294901760
        %v691 = vsub.f32 %v689, %v690
        %v692 = vand.u32 %v691, 4294901760
        %693 = vmatmul.f32.gmra.mxu0 %v692
        %v694 = vpop.f32.mrf.mxu0
        %v695 = vadd.f32 %v478, %v694
        %696 = vdwg.mxu0
        %697 = vmatpush.xpose.msra.mxu0 0.0
        %698 = vmatpush.xpose.msra.mxu0 0.0
        %699 = vmatpush.xpose.msra.mxu0 0.0
        %700 = vmatpush.xpose.msra.mxu0 0.0
        %701 = vmatpush.xpose.msra.mxu0 0.0
        %702 = vmatpush.xpose.msra.mxu0 0.0
        %703 = vmatpush.xpose.msra.mxu0 0.0
        %704 = vmatpush.xpose.msra.mxu0 0.0
        %705 = vmatpush.xpose.msra.mxu0 0.0
        %706 = vmatpush.xpose.msra.mxu0 0.0
        %707 = vmatpush.xpose.msra.mxu0 0.0
        %708 = vmatpush.xpose.msra.mxu0 0.0
        %709 = vmatpush.xpose.msra.mxu0 0.0
        %710 = vmatpush.xpose.msra.mxu0 0.0
        %711 = vmatpush.xpose.msra.mxu0 0.0
        %v712 = vand.u32 %v669, 4294901760
        %v713 = vsub.f32 %v669, %v712
        %v714 = vand.u32 %v713, 4294901760
        %v715 = vsub.f32 %v713, %v714
        %v716 = vand.u32 %v715, 4294901760
        %717 = vmatpush.xpose.msra.mxu0 %v716
        %v718 = vand.u32 %v666, 4294901760
        %719 = vmatmul.f32.gmra.mxu0 %v718
        %v720 = vpop.f32.mrf.mxu0
        %v721 = vadd.f32 %v695, %v720
        %722 = vdwg.mxu0
        %723 = vmatpush.xpose.msra.mxu0 0.0
        %724 = vmatpush.xpose.msra.mxu0 0.0
        %725 = vmatpush.xpose.msra.mxu0 0.0
        %726 = vmatpush.xpose.msra.mxu0 0.0
        %727 = vmatpush.xpose.msra.mxu0 0.0
        %728 = vmatpush.xpose.msra.mxu0 0.0
        %729 = vmatpush.xpose.msra.mxu0 0.0
        %730 = vmatpush.xpose.msra.mxu0 0.0
        %731 = vmatpush.xpose.msra.mxu0 0.0
        %732 = vmatpush.xpose.msra.mxu0 0.0
        %733 = vmatpush.xpose.msra.mxu0 0.0
        %734 = vmatpush.xpose.msra.mxu0 0.0
        %735 = vmatpush.xpose.msra.mxu0 0.0
        %736 = vmatpush.xpose.msra.mxu0 0.0
        %737 = vmatpush.xpose.msra.mxu0 0.0
        %v738 = vand.u32 %v669, 4294901760
        %v739 = vsub.f32 %v669, %v738
        %740 = vmatpush.xpose.msra.mxu0 %v739
        %v741 = vand.u32 %v666, 4294901760
        %v742 = vsub.f32 %v666, %v741
        %743 = vmatmul.f32.gmra.mxu0 %v742
        %v744 = vpop.f32.mrf.mxu0
        %v745 = vadd.f32 %v721, %v744
        %746 = vdwg.mxu0
        %747 = vmatpush.xpose.msra.mxu0 0.0
        %748 = vmatpush.xpose.msra.mxu0 0.0
        %749 = vmatpush.xpose.msra.mxu0 0.0
        %750 = vmatpush.xpose.msra.mxu0 0.0
        %751 = vmatpush.xpose.msra.mxu0 0.0
        %752 = vmatpush.xpose.msra.mxu0 0.0
        %753 = vmatpush.xpose.msra.mxu0 0.0
        %754 = vmatpush.xpose.msra.mxu0 0.0
        %755 = vmatpush.xpose.msra.mxu0 0.0
        %756 = vmatpush.xpose.msra.mxu0 0.0
        %757 = vmatpush.xpose.msra.mxu0 0.0
        %758 = vmatpush.xpose.msra.mxu0 0.0
        %759 = vmatpush.xpose.msra.mxu0 0.0
        %760 = vmatpush.xpose.msra.mxu0 0.0
        %761 = vmatpush.xpose.msra.mxu0 0.0
        %v762 = vand.u32 %v669, 4294901760
        %763 = vmatpush.xpose.msra.mxu0 %v762
        %v764 = vand.u32 %v666, 4294901760
        %v765 = vsub.f32 %v666, %v764
        %v766 = vand.u32 %v765, 4294901760
        %767 = vmatmul.f32.gmra.mxu0 %v766
        %v768 = vpop.f32.mrf.mxu0
        %v769 = vadd.f32 %v745, %v768
        %770 = vdwg.mxu0
        %771 = vmatpush.xpose.msra.mxu0 0.0
        %772 = vmatpush.xpose.msra.mxu0 0.0
        %773 = vmatpush.xpose.msra.mxu0 0.0
        %774 = vmatpush.xpose.msra.mxu0 0.0
        %775 = vmatpush.xpose.msra.mxu0 0.0
        %776 = vmatpush.xpose.msra.mxu0 0.0
        %777 = vmatpush.xpose.msra.mxu0 0.0
        %778 = vmatpush.xpose.msra.mxu0 0.0
        %779 = vmatpush.xpose.msra.mxu0 0.0
        %780 = vmatpush.xpose.msra.mxu0 0.0
        %781 = vmatpush.xpose.msra.mxu0 0.0
        %782 = vmatpush.xpose.msra.mxu0 0.0
        %783 = vmatpush.xpose.msra.mxu0 0.0
        %784 = vmatpush.xpose.msra.mxu0 0.0
        %785 = vmatpush.xpose.msra.mxu0 0.0
        %v786 = vand.u32 %v669, 4294901760
        %v787 = vsub.f32 %v669, %v786
        %v788 = vand.u32 %v787, 4294901760
        %789 = vmatpush.xpose.msra.mxu0 %v788
        %v790 = vand.u32 %v666, 4294901760
        %791 = vmatmul.f32.gmra.mxu0 %v790
        %v792 = vpop.f32.mrf.mxu0
        %v793 = vadd.f32 %v769, %v792
        %794 = vdwg.mxu0
        %795 = vmatpush.xpose.msra.mxu0 0.0
        %796 = vmatpush.xpose.msra.mxu0 0.0
        %797 = vmatpush.xpose.msra.mxu0 0.0
        %798 = vmatpush.xpose.msra.mxu0 0.0
        %799 = vmatpush.xpose.msra.mxu0 0.0
        %800 = vmatpush.xpose.msra.mxu0 0.0
        %801 = vmatpush.xpose.msra.mxu0 0.0
        %802 = vmatpush.xpose.msra.mxu0 0.0
        %803 = vmatpush.xpose.msra.mxu0 0.0
        %804 = vmatpush.xpose.msra.mxu0 0.0
        %805 = vmatpush.xpose.msra.mxu0 0.0
        %806 = vmatpush.xpose.msra.mxu0 0.0
        %807 = vmatpush.xpose.msra.mxu0 0.0
        %808 = vmatpush.xpose.msra.mxu0 0.0
        %809 = vmatpush.xpose.msra.mxu0 0.0
        %v810 = vand.u32 %v669, 4294901760
        %811 = vmatpush.xpose.msra.mxu0 %v810
        %v812 = vand.u32 %v666, 4294901760
        %813 = vmatmul.f32.gmra.mxu0 %v812
        %v814 = vpop.f32.mrf.mxu0
        %v815 = vadd.f32 %v793, %v814
        %816 = vdwg.mxu0
        %v817 = vperm.slane %v815, 0
        %v818 = vlaneseq
        %v819 = vshrl.u32 %v818, 7
        %821 = vset.pattern.permute.xlu0 %v819
        %822 = vperm.xlu0 %821, %v817
        %v823 = vpop.permute.xlu0 %822
        %v826 = vunpack.c.l.s4 839922192
        %v827 = vunpack.c.0.s8 %v826
        %v828 = vperm.slane %v823, %v827
        %v830 = vadd.f32 %v352, %v828
        %831 = vst [vmem:[%s351] sm:$0xff] %v830
        %s832 = sand.u32 %s229, 1
        %s833 = scalar_lea.sflag [#allocation5], %s832
        %s834 = sand.u32 %s229, 1
        %s835 = smul.addr %s834, 8
        %s836 = scalar_lea.vmem [#allocation6], %s835
        // Predicated region
        $region61: #{tpu_custom_call.1} parent=55 // pred_check
          %p837 = pneg %p239
        $region62: #{tpu_custom_call.1} parent=55 // pred_check_branch
          %839 = sbr.rel (%p837) target = $region64
        $region63: #{tpu_custom_call.1} parent=55 // pred_region
          %841 = vsyncadd %s833, 0
          %s842 = smul.addr %s27, 2
          %s843 = smul.addr %s842, 4
          %s844 = scalar_lea.hbm %s9, %s843
          %s846 = sshll.u32 %s836, 4
          %s847 = int_to_ptr.vmem [resolvable:$true] %s846
          %s848 = sshll.u32 %s844, 4
          %s849 = int_to_ptr.hbm [resolvable:$true] %s848
          %851 = dma.vmem_to_hbm [thread:$0]  %s847, 128, %s849, %s833
        $region64: #{tpu_custom_call.1} parent=55 // pred_fallthru
          _
      $region56: #{tpu_custom_call.1} parent=5 // pred_fallthru
        _
      %p852 = scmp.le.s32.totalorder 2, %s22
      // Predicated region
      $region65: #{tpu_custom_call.1} parent=5 // pred_check
        %p853 = pneg %p852
      $region66: #{tpu_custom_call.1} parent=5 // pred_check_branch
        %855 = sbr.rel (%p853) target = $region68
      $region67: #{tpu_custom_call.1} parent=5 // pred_region
        %s856 = ssub.s32 %s22, 2
        // Predicated region
        $region69: #{tpu_custom_call.1} parent=67 // pred_check
          %p857 = pneg %p245
        $region70: #{tpu_custom_call.1} parent=67 // pred_check_branch
          %859 = sbr.rel (%p857) target = $region72
        $region71: #{tpu_custom_call.1} parent=67 // pred_region
          %s860 = sand.u32 %s230, 1
          %s861 = scalar_lea.sflag [#allocation5], %s860
          %s862 = sand.u32 %s230, 1
          %s863 = smul.addr %s862, 8
          %s864 = scalar_lea.vmem [#allocation6], %s863
          %866 = dma.done %s861, 128
        $region72: #{tpu_custom_call.1} parent=67 // pred_fallthru
          _
      $region68: #{tpu_custom_call.1} parent=5 // pred_fallthru
        _
    $region6: #{tpu_custom_call.1} parent=1 // loop_footer
      %s26 = sadd.s32 1, %s22
    $region7: #{tpu_custom_call.1} parent=1 // loop_footer_branch
      %21 = sbr.rel target = $region3
    $region8: #{tpu_custom_call.1} parent=1 // loop_exit
      _
    %867 = vsyncpa [#allocation4], 1
    %s868 = scalar_lea.sflag [#allocation4], 1
    %869 = vsyncpa %s868, 1
    %870 = vsyncpa [#allocation5], 1
    %s871 = scalar_lea.sflag [#allocation5], 1
    %872 = vsyncpa %s871, 1

</llo_original>
